<compile_context>
chip_gen: v7x
topology: tpu7x:2x2x1
jax: 0.10.0
libtpu: 0.0.40
codegen_flags: <defaults>
</compile_context>

<pallas_src>
import jax
import jax.numpy as jnp
from jax.experimental import pallas as pl
from jax.experimental.pallas import tpu as pltpu

P_THRESH = 0.5   # self.p  (branch threshold)
D_DROP = 0.5     # self.d  (dropout prob)  -- dead code w.r.t. the returned x5

_BLK = (8, 128)  # one lane/sublane-aligned f32 vreg tile


def model_kernel(x1_ref, x3_ref, o_ref):
    # x5 = x3 * x1  (the taken branch; see TODO in model_forward)
    # Everything is a single (8,128) lane-dense block -> full-width vst, one DMA.
    o_ref[...] = x3_ref[...] * x1_ref[...]


def model_forward(x1, x2, key):
    del x2  # dropout(x2) never reaches the returned x5 (see TODO below)

    # x3 = torch.rand_like(x1): uniform [0,1).  Generated host-side with
    # jax.random (the TPU hardware PRNG primitives have no CPU/interpret
    # lowering) and materialized directly as one lane-dense (8,128) block;
    # only [0:1, 0:5] corresponds to x3, the rest is harmless padding.
    x3_blk = jax.random.uniform(key, _BLK, dtype=jnp.float32)

    # Pad x1 into the same lane-dense block (rows/lanes beyond (1,5) are zero).
    x1_blk = jnp.zeros(_BLK, jnp.float32).at[: x1.shape[0], : x1.shape[1]].set(x1)

    out_blk = pl.pallas_call(
        model_kernel,
        out_shape=jax.ShapeDtypeStruct(_BLK, jnp.float32),
        in_specs=[
            pl.BlockSpec(memory_space=pltpu.MemorySpace.VMEM),
            pl.BlockSpec(memory_space=pltpu.MemorySpace.VMEM),
        ],
        out_specs=pl.BlockSpec(memory_space=pltpu.MemorySpace.VMEM),
    )(x1_blk, x3_blk)

    x5 = out_blk[: x1.shape[0], : x1.shape[1]]

    # TODO(synk): the else-branch (dropout(x2) * x1) is broadcast-invalid in the
    # PyTorch reference ((3,2,2) * (1,5) raises) and P(x3.sum() <= p) ~= 2.6e-4,
    # so only the taken branch x3*x1 is materialized; the dead dropout(x2)
    # computation and the branch flag were dropped per the performance review.
    return x5


if __name__ == "__main__":
    key = jax.random.PRNGKey(0)
    k1, k2, k3 = jax.random.split(key, 3)
    x1 = jax.random.normal(k1, (1, 5), dtype=jnp.float32)
    x2 = jax.random.normal(k2, (3, 2, 2), dtype=jnp.float32)

    x5 = model_forward(x1, x2, k3)
    jax.block_until_ready(x5)

    assert x5.shape == (1, 5)
    assert bool(jnp.all(jnp.isfinite(x5)))
    print("KERNEL_OK")
</pallas_src>

<mosaic_0001>
module attributes {stable_mosaic.version = 11 : i64} {
  func.func @model_kernel(%arg0: memref<8x128xf32, #tpu.memory_space<vmem>>, %arg1: memref<8x128xf32, #tpu.memory_space<vmem>>, %arg2: memref<8x128xf32, #tpu.memory_space<vmem>>) attributes {dimension_semantics = [], scalar_prefetch = 0 : i64, scratch_operands = 0 : i64, tpu.core_type = #tpu.core_type<tc>} {
    %c0 = arith.constant 0 : index
    %c0_0 = arith.constant 0 : index
    %0 = vector.load %arg1[%c0, %c0_0] : memref<8x128xf32, #tpu.memory_space<vmem>>, vector<8x128xf32>
    %c0_1 = arith.constant 0 : index
    %c0_2 = arith.constant 0 : index
    %1 = vector.load %arg0[%c0_1, %c0_2] : memref<8x128xf32, #tpu.memory_space<vmem>>, vector<8x128xf32>
    %2 = arith.mulf %0, %1 : vector<8x128xf32>
    %c0_3 = arith.constant 0 : index
    %c0_4 = arith.constant 0 : index
    %3 = vector.load %arg2[%c0_3, %c0_4] : memref<8x128xf32, #tpu.memory_space<vmem>>, vector<8x128xf32>
    tpu.vector_store %arg2[%c0_3, %c0_4], %2 {strides = array<i32>} : memref<8x128xf32, #tpu.memory_space<vmem>>, vector<8x128xf32>,
    return
  }
}

</mosaic_0001>

<llo_original>
// kernel: tpu_custom_call.1
$region0: #{tpu_custom_call.1}
  #allocation0 [shape = 'u32[]', space=smem, size = 0x4, offset = 0x4, fixed_abs, tag = 'smem constant byte address 0x4 - core index']
  #allocation1 [shape = 'u32[144,128]{1,0:T(1,128)}', space=vmem, size = 0x12000, scoped, tag = 'internal scratch']
  %s0 = inlined_call_operand.hbm [shape: f32[8,128], index: 0, kind: input, shape index: {}]
  %s1 = inlined_call_operand.hbm [shape: f32[8,128], index: 1, kind: input, shape index: {}]
  %s2 = inlined_call_operand.hbm [shape: f32[8,128], index: 2, kind: output, shape index: {}]
  %s3 = sld [smem:[#allocation0]]
  $region26: #{tpu_custom_call.1} parent=0
    _
  %s5 = ssub.s32 1, %s3
  %s6 = scalar_select 0, %s5, %s3
  $region1: #{tpu_custom_call.1} parent=0
    #allocation2 [shape = 'u8[4096]{0}', space=vmem, size = 0x1000, scoped, tag = 'input window, operand 0, single buffered']
    #allocation3 [shape = 's32[1]{0}', space=sflag, size = 0x4, scoped, tag = 'scoped memory for tpu_custom_call.1']
    #allocation4 [shape = 's32[1]{0}', space=sflag, size = 0x4, scoped, tag = 'scoped memory for tpu_custom_call.1']
    #allocation5 [shape = 'u8[4096]{0}', space=vmem, size = 0x1000, scoped, tag = 'input window, operand 1, single buffered']
    #allocation6 [shape = 's32[1]{0}', space=sflag, size = 0x4, scoped, tag = 'scoped memory for tpu_custom_call.1']
    #allocation7 [shape = 'u8[4096]{0}', space=vmem, size = 0x1000, scoped, tag = 'output window, operand 0, single buffered']
    %7 = vsyncpa [#allocation3], 0
    %8 = vsyncpa [#allocation6], 0
    %9 = vsyncpa [#allocation4], 0
    // Predicated region
    $region2: #{tpu_custom_call.1} parent=1 // pred_check
      _
    $region3: #{tpu_custom_call.1} parent=1 // pred_check_branch
      %11 = sbr.rel (0) target = $region5
    $region4: #{tpu_custom_call.1} parent=1 // pred_region
      %s13 = ssub.s32 128, 128
      %14 = vsyncadd [#allocation3], %s13
      %s16 = sshll.u32 [#allocation2], 4
      %s17 = int_to_ptr.vmem [resolvable:$true] %s16
      %19 = dma.hbm_to_vmem [thread:$0]  %s0, 128, %s17, [#allocation3]
    $region5: #{tpu_custom_call.1} parent=1 // pred_fallthru
      _
    // Predicated region
    $region6: #{tpu_custom_call.1} parent=1 // pred_check
      _
    $region7: #{tpu_custom_call.1} parent=1 // pred_check_branch
      %21 = sbr.rel (0) target = $region9
    $region8: #{tpu_custom_call.1} parent=1 // pred_region
      %s23 = ssub.s32 128, 128
      %24 = vsyncadd [#allocation6], %s23
      %s26 = sshll.u32 [#allocation5], 4
      %s27 = int_to_ptr.vmem [resolvable:$true] %s26
      %29 = dma.hbm_to_vmem [thread:$0]  %s1, 128, %s27, [#allocation6]
    $region9: #{tpu_custom_call.1} parent=1 // pred_fallthru
      _
    // Predicated region
    $region10: #{tpu_custom_call.1} parent=1 // pred_check
      _
    $region11: #{tpu_custom_call.1} parent=1 // pred_check_branch
      %31 = sbr.rel (0) target = $region13
    $region12: #{tpu_custom_call.1} parent=1 // pred_region
      %32 = dma.done [#allocation3], 128
    $region13: #{tpu_custom_call.1} parent=1 // pred_fallthru
      _
    // Predicated region
    $region14: #{tpu_custom_call.1} parent=1 // pred_check
      _
    $region15: #{tpu_custom_call.1} parent=1 // pred_check_branch
      %34 = sbr.rel (0) target = $region17
    $region16: #{tpu_custom_call.1} parent=1 // pred_region
      %35 = dma.done [#allocation6], 128
    $region17: #{tpu_custom_call.1} parent=1 // pred_fallthru
      _
    %v36 = vld [vmem:[#allocation5] sm:$0xff]
    %v37 = vld [vmem:[#allocation2] sm:$0xff]
    %v38 = vmul.f32 %v36, %v37
    %39 = vst [vmem:[#allocation7] sm:$0xff] %v38
    // Predicated region
    $region18: #{tpu_custom_call.1} parent=1 // pred_check
      _
    $region19: #{tpu_custom_call.1} parent=1 // pred_check_branch
      %41 = sbr.rel (0) target = $region21
    $region20: #{tpu_custom_call.1} parent=1 // pred_region
      %s43 = ssub.s32 128, 128
      %44 = vsyncadd [#allocation4], %s43
      %s46 = sshll.u32 [#allocation7], 4
      %s47 = int_to_ptr.vmem [resolvable:$true] %s46
      %49 = dma.vmem_to_hbm [thread:$0]  %s47, 128, %s2, [#allocation4]
    $region21: #{tpu_custom_call.1} parent=1 // pred_fallthru
      _
    // Predicated region
    $region22: #{tpu_custom_call.1} parent=1 // pred_check
      _
    $region23: #{tpu_custom_call.1} parent=1 // pred_check_branch
      %51 = sbr.rel (0) target = $region25
    $region24: #{tpu_custom_call.1} parent=1 // pred_region
      %52 = dma.done [#allocation4], 128
    $region25: #{tpu_custom_call.1} parent=1 // pred_fallthru
      _
    %53 = vsyncpa [#allocation3], 1
    %54 = vsyncpa [#allocation6], 1
    %55 = vsyncpa [#allocation4], 1

</llo_original>
